<compile_context>
chip_gen: v5e
topology: v5e:2x2
jax: 0.10.0
libtpu: 0.0.40
codegen_flags: <defaults>
</compile_context>

<pallas_src>
import jax
import jax.numpy as jnp
from jax.experimental import pallas as pl
from jax.experimental.pallas import tpu as pltpu


def _round_up(x, m):
    return (x + m - 1) // m * m


def _fused_hyper_mlp_kernel(k_ref, x_ref, a_ref, fb_ref, bw_ref, bb_ref,
                            o_ref, acc_ref, w_ref):
    """One grid step: generate a (TK, TN) tile of w.T in VMEM, apply it to x."""
    kk = pl.program_id(2)
    knob = a_ref.shape[0]

    @pl.when(kk == 0)
    def _():
        acc_ref[...] = jnp.zeros_like(acc_ref)

    # --- hypernetwork: w_t[i, o] = ff_b[i, o] + sum_c k[c] * ff_w_perm[c, i, o] ------
    # k lives in SMEM; each term is a scalar * (TK, TN) VPU FMA in f32 (portable:
    # v5e has no bf16 VPU).  With grid_m == 1 this runs once per weight tile.
    wt = fb_ref[...].astype(jnp.float32)
    for c in range(knob):                        # knob is small & static -> unrolled
        wt = wt + k_ref[c] * a_ref[c].astype(jnp.float32)
    # Materialize the generated tile in the MXU streaming dtype (bf16 on the fast
    # path): halves the scratch store traffic and lets the dot below run as a
    # single-pass bf16 x bf16 MXU op.
    w_ref[...] = wt.astype(w_ref.dtype)

    # --- apply the generated linear layer: acc += x_tile @ w_t (MXU, f32 acc) --------
    acc_ref[...] += jnp.dot(x_ref[...], w_ref[...],
                            preferred_element_type=jnp.float32)

    # --- epilogue: fuse the generated bias, write the lane-dense output tile ---------
    @pl.when(kk == pl.num_programs(2) - 1)
    def _():
        bw = bw_ref[...].astype(jnp.float32)     # (knob, TN)
        bgen = bb_ref[...]                       # (1, TN), f32
        for c in range(knob):
            bgen = bgen + k_ref[c] * bw[c:c + 1, :]
        o_ref[...] = (acc_ref[...] + bgen).astype(o_ref.dtype)


def init_hyper_mlp_params(key, knob_dim, input_dim, output_dim):
    """Raw nn.Linear-shaped parameters (same layout as the PyTorch module)."""
    k1, k2, k3, k4 = jax.random.split(key, 4)
    scale = 1.0 / jnp.sqrt(knob_dim)
    return {
        "ff_w": jax.random.normal(k1, (input_dim * output_dim, knob_dim),
                                  jnp.float32) * scale,
        "ff_b": jax.random.normal(k2, (input_dim * output_dim,),
                                  jnp.float32) * scale,
        "b_w": jax.random.normal(k3, (output_dim, knob_dim), jnp.float32) * scale,
        "b_b": jax.random.normal(k4, (output_dim,), jnp.float32) * scale,
    }


def prepare_hyper_mlp_params(params, input_dim, output_dim, *,
                             weight_dtype=jnp.bfloat16,
                             tile_n=None, tile_k=None,
                             max_stream_tile_bytes=8 * 1024 * 1024):
    """One-time re-layout/padding of the hypernet parameters for the fused kernel.

    ff_w (in*out, knob) is permuted to A[c, i, o] = ff_w[o*in + i, c] so the kernel
    produces w.T tiles directly (no runtime reshape/transpose), padded to lane-dense
    tile multiples and cast to the streaming dtype.
    """
    knob = params["ff_w"].shape[1]

    # Larger default tiles than before: amortizes per-step overhead and cuts x
    # re-streaming; the streamed (double-buffered) A tile is still capped per buffer
    # so the total working set remains well under v7x's 64 MiB VMEM.
    tn = tile_n if tile_n is not None else min(512, _round_up(output_dim, 128))
    tk = tile_k if tile_k is not None else min(1024, _round_up(input_dim, 128))
    assert tn % 128 == 0 and tk % 128 == 0, "tiles must be lane-aligned (x128)"

    wbytes = jnp.dtype(weight_dtype).itemsize
    while knob * tk * tn * wbytes > max_stream_tile_bytes and tk > 128:
        tk = max(128, (tk // 2) // 128 * 128)
    while knob * tk * tn * wbytes > max_stream_tile_bytes and tn > 128:
        tn = max(128, (tn // 2) // 128 * 128)

    in_p = _round_up(input_dim, tk)
    out_p = _round_up(output_dim, tn)

    a = params["ff_w"].reshape(output_dim, input_dim, knob).transpose(2, 1, 0)
    a = jnp.pad(a, ((0, 0), (0, in_p - input_dim), (0, out_p - output_dim)))
    fb = params["ff_b"].reshape(output_dim, input_dim).T
    fb = jnp.pad(fb, ((0, in_p - input_dim), (0, out_p - output_dim)))
    bw = jnp.pad(params["b_w"].T, ((0, 0), (0, out_p - output_dim)))
    bb = jnp.pad(params["b_b"].reshape(1, output_dim),
                 ((0, 0), (0, out_p - output_dim)))

    return {
        "a": a.astype(weight_dtype),           # (knob, in_p, out_p) streamed dtype
        "fb": fb.astype(weight_dtype),         # (in_p, out_p)
        "bw": bw.astype(jnp.float32),          # (knob, out_p)
        "bb": bb.astype(jnp.float32),          # (1, out_p)
        "knob": knob, "in_dim": input_dim, "out_dim": output_dim,
        "in_p": in_p, "out_p": out_p, "tk": tk, "tn": tn,
        "weight_dtype": weight_dtype,
    }


def hyper_mlp_forward(k, x, prep, *, tile_m=None, out_dtype=jnp.float32,
                      vmem_budget_bytes=40 * 1024 * 1024):
    """JAX/Pallas equivalent of HyperMLP.forward(k, x), fully fused."""
    knob, in_dim, out_dim = prep["knob"], prep["in_dim"], prep["out_dim"]
    in_p, out_p, tk, tn = prep["in_p"], prep["out_p"], prep["tk"], prep["tn"]
    wdt = prep["weight_dtype"]
    wbytes = jnp.dtype(wdt).itemsize
    obytes = jnp.dtype(out_dtype).itemsize

    k_flat = k.reshape(-1).astype(jnp.float32)          # k.view(-1)
    assert k_flat.shape[0] == knob, "k must flatten to knob_dim elements"

    bsz = x.shape[0]
    # bf16 native tile is (16, 128): pad batch to 16 rows so packed sublanes are full.
    sub = 16 if wbytes == 2 else 8

    # VMEM working-set accounting (double-buffered inputs + scratch), used both to
    # pick the batch tile and to size the scoped-VMEM limit.
    fixed = (2 * knob * tk * tn * wbytes        # A (permuted ff_w), double buffered
             + 2 * tk * tn * wbytes             # ff_b tile, double buffered
             + tk * tn * wbytes                 # generated-w scratch
             + 2 * knob * tn * 4 + 2 * tn * 4)  # bias params (tiny)
    per_row = 2 * tk * wbytes + tn * 4 + 2 * tn * obytes   # x dbuf + acc + out dbuf

    if tile_m is not None:
        tm = tile_m
        assert tm % sub == 0, f"tile_m must be a multiple of {sub}"
    else:
        # Cover the whole (padded) batch whenever VMEM allows, so the dominant HBM
        # stream (A) is read exactly once and the hypernet weight generation runs
        # exactly once per output tile (grid_m == 1 is the fast path).
        tm_max = max(sub,
                     (max(vmem_budget_bytes - fixed, 0) // per_row) // sub * sub)
        tm = min(_round_up(bsz, sub), tm_max)
    b_p = _round_up(bsz, tm)

    x_p = jnp.pad(x.astype(wdt), ((0, b_p - bsz), (0, in_p - in_dim)))

    grid = (b_p // tm, out_p // tn, in_p // tk)         # reduction (in_dim) last
    grid_m, grid_n, _ = grid

    # Explicit scoped-VMEM limit: enough for the actual working set, never above
    # 48 MiB (safe on v5e/v6e 128 MiB and v7x 64 MiB physical VMEM).
    vmem_limit = int(min(48 * 1024 * 1024,
                         max(32 * 1024 * 1024, fixed + tm * per_row + (2 << 20))))

    flops = (2 * knob * in_p * out_p * grid_m            # weight generation
             + 2 * b_p * in_p * out_p                    # x @ w.T
             + 2 * knob * out_p * grid_m)                # bias generation
    bytes_accessed = (grid_m * (prep["a"].size * wbytes + prep["fb"].size * wbytes
                                + prep["bw"].size * 4 + prep["bb"].size * 4)
                      + grid_n * x_p.size * wbytes
                      + b_p * out_p * obytes
                      + knob * 4)

    h_p = pl.pallas_call(
        _fused_hyper_mlp_kernel,
        out_shape=jax.ShapeDtypeStruct((b_p, out_p), out_dtype),
        grid=grid,
        in_specs=[
            pl.BlockSpec(memory_space=pltpu.MemorySpace.SMEM),          # k  (knob,)
            pl.BlockSpec((tm, tk), lambda m, n, kk: (m, kk)),           # x
            pl.BlockSpec((knob, tk, tn), lambda m, n, kk: (0, kk, n)),  # ff_w perm
            pl.BlockSpec((tk, tn), lambda m, n, kk: (kk, n)),           # ff_b (in,out)
            pl.BlockSpec((knob, tn), lambda m, n, kk: (0, n)),          # b_w.T
            pl.BlockSpec((1, tn), lambda m, n, kk: (0, n)),             # b_b
        ],
        out_specs=pl.BlockSpec((tm, tn), lambda m, n, kk: (m, n)),
        scratch_shapes=[
            pltpu.VMEM((tm, tn), jnp.float32),                          # f32 accumulator
            pltpu.VMEM((tk, tn), wdt),                                  # generated w.T
        ],
        compiler_params=pltpu.CompilerParams(
            # Megacore split over out_dim (n): the A stream is independent of m, so
            # splitting over m would make both TensorCores stream the full A tensor.
            dimension_semantics=("arbitrary", "parallel", "arbitrary"),
            vmem_limit_bytes=vmem_limit),
        cost_estimate=pl.CostEstimate(flops=flops, transcendentals=0,
                                      bytes_accessed=bytes_accessed),
    )(k_flat, x_p, prep["a"], prep["fb"], prep["bw"], prep["bb"])

    return h_p[:bsz, :out_dim]


def hyper_mlp_reference(k, x, params, input_dim, output_dim):
    """Pure-JAX reference mirroring the PyTorch forward (f32)."""
    kf = k.reshape(-1)
    w = (params["ff_w"] @ kf + params["ff_b"]).reshape(output_dim, input_dim)
    b = params["b_w"] @ kf + params["b_b"]
    return x @ w.T + b


if __name__ == "__main__":
    # Small shapes; batch / out_dim intentionally NOT tile multiples to exercise
    # the pad-and-slice path.
    knob_dim, input_dim, output_dim, batch = 8, 256, 192, 12

    root = jax.random.PRNGKey(0)
    kp, kknob, kx = jax.random.split(root, 3)
    params = init_hyper_mlp_params(kp, knob_dim, input_dim, output_dim)

    k = jax.random.normal(kknob, (1, knob_dim), jnp.float32)   # conditioning knob
    x = jax.random.normal(kx, (batch, input_dim), jnp.float32)

    ref = hyper_mlp_reference(k, x, params, input_dim, output_dim)
    scale = jnp.max(jnp.abs(ref))

    # f32-streamed variant with small explicit tiles (grid 1x2x2): tight math check.
    prep32 = prepare_hyper_mlp_params(params, input_dim, output_dim,
                                      weight_dtype=jnp.float32,
                                      tile_n=128, tile_k=128)
    h32 = jax.block_until_ready(hyper_mlp_forward(k, x, prep32))
    assert h32.shape == (batch, output_dim)
    err32 = float(jnp.max(jnp.abs(h32 - ref)) / scale)
    assert err32 < 1e-4, f"f32 mismatch vs reference: {err32}"

    # bf16 fast path (default tiles, whole-batch m tile, bf16 MXU), f32 accumulation.
    prep16 = prepare_hyper_mlp_params(params, input_dim, output_dim,
                                      weight_dtype=jnp.bfloat16)
    h16 = jax.block_until_ready(hyper_mlp_forward(k, x, prep16))
    assert h16.shape == (batch, output_dim)
    err16 = float(jnp.max(jnp.abs(h16 - ref)) / scale)
    assert err16 < 5e-2, f"bf16 mismatch vs reference: {err16}"

    print("KERNEL_OK")
</pallas_src>

<mosaic_0001>
module attributes {stable_mosaic.version = 11 : i64} {
  func.func @_fused_hyper_mlp_kernel(%arg0: i32, %arg1: i32, %arg2: i32, %arg3: memref<8xf32, #tpu.memory_space<smem>>, %arg4: memref<16x128xf32, #tpu.memory_space<vmem>>, %arg5: memref<8x128x128xf32, #tpu.memory_space<vmem>>, %arg6: memref<128x128xf32, #tpu.memory_space<vmem>>, %arg7: memref<8x128xf32, #tpu.memory_space<vmem>>, %arg8: memref<1x128xf32, #tpu.memory_space<vmem>>, %arg9: memref<16x128xf32, #tpu.memory_space<vmem>>, %arg10: memref<16x128xf32, #tpu.memory_space<vmem>>, %arg11: memref<128x128xf32, #tpu.memory_space<vmem>>) attributes {dimension_semantics = [#tpu.dimension_semantics<arbitrary>, #tpu.dimension_semantics<parallel>, #tpu.dimension_semantics<arbitrary>], iteration_bounds = array<i64: 1, 2, 2>, scalar_prefetch = 0 : i64, scratch_operands = 2 : i64, tpu.core_type = #tpu.core_type<tc>, window_params = [{transform_indices = @transform_0, window_bounds = array<i64: 8>}, {transform_indices = @transform_1, window_bounds = array<i64: 16, 128>}, {transform_indices = @transform_2, window_bounds = array<i64: 8, 128, 128>}, {transform_indices = @transform_3, window_bounds = array<i64: 128, 128>}, {transform_indices = @transform_4, window_bounds = array<i64: 8, 128>}, {transform_indices = @transform_5, window_bounds = array<i64: 1, 128>}, {transform_indices = @transform_6, window_bounds = array<i64: 16, 128>}]} {
    %c0_i32 = arith.constant 0 : i32
    %0 = arith.cmpi eq, %arg2, %c0_i32 : i32
    %1 = arith.extui %0 : i1 to i32
    %c0_i32_0 = arith.constant 0 : i32
    %2 = arith.cmpi ne, %1, %c0_i32_0 : i32
    scf.if %2 {
      %cst_38 = arith.constant 0.000000e+00 : f32
      %62 = vector.broadcast %cst_38 : f32 to vector<16x128xf32>
      %c0_39 = arith.constant 0 : index
      %c0_40 = arith.constant 0 : index
      %63 = vector.load %arg10[%c0_39, %c0_40] : memref<16x128xf32, #tpu.memory_space<vmem>>, vector<16x128xf32>
      tpu.vector_store %arg10[%c0_39, %c0_40], %62 {strides = array<i32>} : memref<16x128xf32, #tpu.memory_space<vmem>>, vector<16x128xf32>,
    } else {
    }
    %c0 = arith.constant 0 : index
    %c0_1 = arith.constant 0 : index
    %3 = vector.load %arg6[%c0, %c0_1] : memref<128x128xf32, #tpu.memory_space<vmem>>, vector<128x128xf32>
    %c0_2 = arith.constant 0 : index
    %4 = memref.load %arg3[%c0_2] : memref<8xf32, #tpu.memory_space<smem>>
    %c0_3 = arith.constant 0 : index
    %c0_4 = arith.constant 0 : index
    %c0_5 = arith.constant 0 : index
    %5 = vector.load %arg5[%c0_3, %c0_4, %c0_5] : memref<8x128x128xf32, #tpu.memory_space<vmem>>, vector<1x128x128xf32>
    %6 = vector.shape_cast %5 : vector<1x128x128xf32> to vector<128x128xf32>
    %7 = vector.broadcast %4 : f32 to vector<128x128xf32>
    %8 = arith.mulf %7, %6 : vector<128x128xf32>
    %9 = arith.addf %3, %8 : vector<128x128xf32>
    %c1 = arith.constant 1 : index
    %10 = memref.load %arg3[%c1] : memref<8xf32, #tpu.memory_space<smem>>
    %c1_6 = arith.constant 1 : index
    %c0_7 = arith.constant 0 : index
    %c0_8 = arith.constant 0 : index
    %11 = vector.load %arg5[%c1_6, %c0_7, %c0_8] : memref<8x128x128xf32, #tpu.memory_space<vmem>>, vector<1x128x128xf32>
    %12 = vector.shape_cast %11 : vector<1x128x128xf32> to vector<128x128xf32>
    %13 = vector.broadcast %10 : f32 to vector<128x128xf32>
    %14 = arith.mulf %13, %12 : vector<128x128xf32>
    %15 = arith.addf %9, %14 : vector<128x128xf32>
    %c2 = arith.constant 2 : index
    %16 = memref.load %arg3[%c2] : memref<8xf32, #tpu.memory_space<smem>>
    %c2_9 = arith.constant 2 : index
    %c0_10 = arith.constant 0 : index
    %c0_11 = arith.constant 0 : index
    %17 = vector.load %arg5[%c2_9, %c0_10, %c0_11] : memref<8x128x128xf32, #tpu.memory_space<vmem>>, vector<1x128x128xf32>
    %18 = vector.shape_cast %17 : vector<1x128x128xf32> to vector<128x128xf32>
    %19 = vector.broadcast %16 : f32 to vector<128x128xf32>
    %20 = arith.mulf %19, %18 : vector<128x128xf32>
    %21 = arith.addf %15, %20 : vector<128x128xf32>
    %c3 = arith.constant 3 : index
    %22 = memref.load %arg3[%c3] : memref<8xf32, #tpu.memory_space<smem>>
    %c3_12 = arith.constant 3 : index
    %c0_13 = arith.constant 0 : index
    %c0_14 = arith.constant 0 : index
    %23 = vector.load %arg5[%c3_12, %c0_13, %c0_14] : memref<8x128x128xf32, #tpu.memory_space<vmem>>, vector<1x128x128xf32>
    %24 = vector.shape_cast %23 : vector<1x128x128xf32> to vector<128x128xf32>
    %25 = vector.broadcast %22 : f32 to vector<128x128xf32>
    %26 = arith.mulf %25, %24 : vector<128x128xf32>
    %27 = arith.addf %21, %26 : vector<128x128xf32>
    %c4 = arith.constant 4 : index
    %28 = memref.load %arg3[%c4] : memref<8xf32, #tpu.memory_space<smem>>
    %c4_15 = arith.constant 4 : index
    %c0_16 = arith.constant 0 : index
    %c0_17 = arith.constant 0 : index
    %29 = vector.load %arg5[%c4_15, %c0_16, %c0_17] : memref<8x128x128xf32, #tpu.memory_space<vmem>>, vector<1x128x128xf32>
    %30 = vector.shape_cast %29 : vector<1x128x128xf32> to vector<128x128xf32>
    %31 = vector.broadcast %28 : f32 to vector<128x128xf32>
    %32 = arith.mulf %31, %30 : vector<128x128xf32>
    %33 = arith.addf %27, %32 : vector<128x128xf32>
    %c5 = arith.constant 5 : index
    %34 = memref.load %arg3[%c5] : memref<8xf32, #tpu.memory_space<smem>>
    %c5_18 = arith.constant 5 : index
    %c0_19 = arith.constant 0 : index
    %c0_20 = arith.constant 0 : index
    %35 = vector.load %arg5[%c5_18, %c0_19, %c0_20] : memref<8x128x128xf32, #tpu.memory_space<vmem>>, vector<1x128x128xf32>
    %36 = vector.shape_cast %35 : vector<1x128x128xf32> to vector<128x128xf32>
    %37 = vector.broadcast %34 : f32 to vector<128x128xf32>
    %38 = arith.mulf %37, %36 : vector<128x128xf32>
    %39 = arith.addf %33, %38 : vector<128x128xf32>
    %c6 = arith.constant 6 : index
    %40 = memref.load %arg3[%c6] : memref<8xf32, #tpu.memory_space<smem>>
    %c6_21 = arith.constant 6 : index
    %c0_22 = arith.constant 0 : index
    %c0_23 = arith.constant 0 : index
    %41 = vector.load %arg5[%c6_21, %c0_22, %c0_23] : memref<8x128x128xf32, #tpu.memory_space<vmem>>, vector<1x128x128xf32>
    %42 = vector.shape_cast %41 : vector<1x128x128xf32> to vector<128x128xf32>
    %43 = vector.broadcast %40 : f32 to vector<128x128xf32>
    %44 = arith.mulf %43, %42 : vector<128x128xf32>
    %45 = arith.addf %39, %44 : vector<128x128xf32>
    %c7 = arith.constant 7 : index
    %46 = memref.load %arg3[%c7] : memref<8xf32, #tpu.memory_space<smem>>
    %c7_24 = arith.constant 7 : index
    %c0_25 = arith.constant 0 : index
    %c0_26 = arith.constant 0 : index
    %47 = vector.load %arg5[%c7_24, %c0_25, %c0_26] : memref<8x128x128xf32, #tpu.memory_space<vmem>>, vector<1x128x128xf32>
    %48 = vector.shape_cast %47 : vector<1x128x128xf32> to vector<128x128xf32>
    %49 = vector.broadcast %46 : f32 to vector<128x128xf32>
    %50 = arith.mulf %49, %48 : vector<128x128xf32>
    %51 = arith.addf %45, %50 : vector<128x128xf32>
    %c0_27 = arith.constant 0 : index
    %c0_28 = arith.constant 0 : index
    %52 = vector.load %arg11[%c0_27, %c0_28] : memref<128x128xf32, #tpu.memory_space<vmem>>, vector<128x128xf32>
    tpu.vector_store %arg11[%c0_27, %c0_28], %51 {strides = array<i32>} : memref<128x128xf32, #tpu.memory_space<vmem>>, vector<128x128xf32>,
    %c0_29 = arith.constant 0 : index
    %c0_30 = arith.constant 0 : index
    %53 = vector.load %arg10[%c0_29, %c0_30] : memref<16x128xf32, #tpu.memory_space<vmem>>, vector<16x128xf32>
    %c0_31 = arith.constant 0 : index
    %c0_32 = arith.constant 0 : index
    %54 = vector.load %arg4[%c0_31, %c0_32] : memref<16x128xf32, #tpu.memory_space<vmem>>, vector<16x128xf32>
    %c0_33 = arith.constant 0 : index
    %c0_34 = arith.constant 0 : index
    %55 = vector.load %arg11[%c0_33, %c0_34] : memref<128x128xf32, #tpu.memory_space<vmem>>, vector<128x128xf32>
    %cst = arith.constant dense<0.000000e+00> : vector<16x128xf32>
    %56 = tpu.matmul %54, %55, %cst {dimension_numbers = #tpu.dot_dimension_numbers<[1], [0], [0], [1], [0, 0, 1, 1], [], []>} : vector<16x128xf32>, vector<128x128xf32>, vector<16x128xf32> -> vector<16x128xf32>
    %57 = arith.addf %53, %56 : vector<16x128xf32>
    %c0_35 = arith.constant 0 : index
    %c0_36 = arith.constant 0 : index
    %58 = vector.load %arg10[%c0_35, %c0_36] : memref<16x128xf32, #tpu.memory_space<vmem>>, vector<16x128xf32>
    tpu.vector_store %arg10[%c0_35, %c0_36], %57 {strides = array<i32>} : memref<16x128xf32, #tpu.memory_space<vmem>>, vector<16x128xf32>,
    %c1_i32 = arith.constant 1 : i32
    %59 = arith.cmpi eq, %arg2, %c1_i32 : i32
    %60 = arith.extui %59 : i1 to i32
    %c0_i32_37 = arith.constant 0 : i32
    %61 = arith.cmpi ne, %60, %c0_i32_37 : i32
    scf.if %61 {
      %c0_38 = arith.constant 0 : index
      %c0_39 = arith.constant 0 : index
      %62 = vector.load %arg7[%c0_38, %c0_39] : memref<8x128xf32, #tpu.memory_space<vmem>>, vector<8x128xf32>
      %c0_40 = arith.constant 0 : index
      %c0_41 = arith.constant 0 : index
      %63 = vector.load %arg8[%c0_40, %c0_41] : memref<1x128xf32, #tpu.memory_space<vmem>>, vector<1x128xf32>
      %c0_42 = arith.constant 0 : index
      %64 = memref.load %arg3[%c0_42] : memref<8xf32, #tpu.memory_space<smem>>
      %65 = vector.extract_strided_slice %62 {offsets = [0, 0], sizes = [1, 128], strides = [1, 1]} : vector<8x128xf32> to vector<1x128xf32>
      %66 = vector.broadcast %64 : f32 to vector<1x128xf32>
      %67 = arith.mulf %66, %65 : vector<1x128xf32>
      %68 = arith.addf %63, %67 : vector<1x128xf32>
      %c1_43 = arith.constant 1 : index
      %69 = memref.load %arg3[%c1_43] : memref<8xf32, #tpu.memory_space<smem>>
      %70 = vector.extract_strided_slice %62 {offsets = [1, 0], sizes = [1, 128], strides = [1, 1]} : vector<8x128xf32> to vector<1x128xf32>
      %71 = vector.broadcast %69 : f32 to vector<1x128xf32>
      %72 = arith.mulf %71, %70 : vector<1x128xf32>
      %73 = arith.addf %68, %72 : vector<1x128xf32>
      %c2_44 = arith.constant 2 : index
      %74 = memref.load %arg3[%c2_44] : memref<8xf32, #tpu.memory_space<smem>>
      %75 = vector.extract_strided_slice %62 {offsets = [2, 0], sizes = [1, 128], strides = [1, 1]} : vector<8x128xf32> to vector<1x128xf32>
      %76 = vector.broadcast %74 : f32 to vector<1x128xf32>
      %77 = arith.mulf %76, %75 : vector<1x128xf32>
      %78 = arith.addf %73, %77 : vector<1x128xf32>
      %c3_45 = arith.constant 3 : index
      %79 = memref.load %arg3[%c3_45] : memref<8xf32, #tpu.memory_space<smem>>
      %80 = vector.extract_strided_slice %62 {offsets = [3, 0], sizes = [1, 128], strides = [1, 1]} : vector<8x128xf32> to vector<1x128xf32>
      %81 = vector.broadcast %79 : f32 to vector<1x128xf32>
      %82 = arith.mulf %81, %80 : vector<1x128xf32>
      %83 = arith.addf %78, %82 : vector<1x128xf32>
      %c4_46 = arith.constant 4 : index
      %84 = memref.load %arg3[%c4_46] : memref<8xf32, #tpu.memory_space<smem>>
      %85 = vector.extract_strided_slice %62 {offsets = [4, 0], sizes = [1, 128], strides = [1, 1]} : vector<8x128xf32> to vector<1x128xf32>
      %86 = vector.broadcast %84 : f32 to vector<1x128xf32>
      %87 = arith.mulf %86, %85 : vector<1x128xf32>
      %88 = arith.addf %83, %87 : vector<1x128xf32>
      %c5_47 = arith.constant 5 : index
      %89 = memref.load %arg3[%c5_47] : memref<8xf32, #tpu.memory_space<smem>>
      %90 = vector.extract_strided_slice %62 {offsets = [5, 0], sizes = [1, 128], strides = [1, 1]} : vector<8x128xf32> to vector<1x128xf32>
      %91 = vector.broadcast %89 : f32 to vector<1x128xf32>
      %92 = arith.mulf %91, %90 : vector<1x128xf32>
      %93 = arith.addf %88, %92 : vector<1x128xf32>
      %c6_48 = arith.constant 6 : index
      %94 = memref.load %arg3[%c6_48] : memref<8xf32, #tpu.memory_space<smem>>
      %95 = vector.extract_strided_slice %62 {offsets = [6, 0], sizes = [1, 128], strides = [1, 1]} : vector<8x128xf32> to vector<1x128xf32>
      %96 = vector.broadcast %94 : f32 to vector<1x128xf32>
      %97 = arith.mulf %96, %95 : vector<1x128xf32>
      %98 = arith.addf %93, %97 : vector<1x128xf32>
      %c7_49 = arith.constant 7 : index
      %99 = memref.load %arg3[%c7_49] : memref<8xf32, #tpu.memory_space<smem>>
      %100 = vector.extract_strided_slice %62 {offsets = [7, 0], sizes = [1, 128], strides = [1, 1]} : vector<8x128xf32> to vector<1x128xf32>
      %101 = vector.broadcast %99 : f32 to vector<1x128xf32>
      %102 = arith.mulf %101, %100 : vector<1x128xf32>
      %103 = arith.addf %98, %102 : vector<1x128xf32>
      %c0_50 = arith.constant 0 : index
      %c0_51 = arith.constant 0 : index
      %104 = vector.load %arg10[%c0_50, %c0_51] : memref<16x128xf32, #tpu.memory_space<vmem>>, vector<16x128xf32>
      %105 = vector.broadcast %103 : vector<1x128xf32> to vector<16x128xf32>
      %106 = arith.addf %104, %105 : vector<16x128xf32>
      %c0_52 = arith.constant 0 : index
      %c0_53 = arith.constant 0 : index
      %107 = vector.load %arg9[%c0_52, %c0_53] : memref<16x128xf32, #tpu.memory_space<vmem>>, vector<16x128xf32>
      tpu.vector_store %arg9[%c0_52, %c0_53], %106 {strides = array<i32>} : memref<16x128xf32, #tpu.memory_space<vmem>>, vector<16x128xf32>,
    } else {
    }
    return
  }
  func.func @transform_0(%arg0: i32, %arg1: i32, %arg2: i32) -> i32 {
    %c0_i32 = arith.constant 0 : i32
    %c0_i32_0 = arith.constant 0 : i32
    return %c0_i32 : i32
  }
  func.func @transform_1(%arg0: i32, %arg1: i32, %arg2: i32) -> (i32, i32) {
    %c0_i32 = arith.constant 0 : i32
    return %arg0, %arg2 : i32, i32
  }
  func.func @transform_2(%arg0: i32, %arg1: i32, %arg2: i32) -> (i32, i32, i32) {
    %c0_i32 = arith.constant 0 : i32
    %c0_i32_0 = arith.constant 0 : i32
    return %c0_i32, %arg2, %arg1 : i32, i32, i32
  }
  func.func @transform_3(%arg0: i32, %arg1: i32, %arg2: i32) -> (i32, i32) {
    %c0_i32 = arith.constant 0 : i32
    return %arg2, %arg1 : i32, i32
  }
  func.func @transform_4(%arg0: i32, %arg1: i32, %arg2: i32) -> (i32, i32) {
    %c0_i32 = arith.constant 0 : i32
    %c0_i32_0 = arith.constant 0 : i32
    return %c0_i32, %arg1 : i32, i32
  }
  func.func @transform_5(%arg0: i32, %arg1: i32, %arg2: i32) -> (i32, i32) {
    %c0_i32 = arith.constant 0 : i32
    %c0_i32_0 = arith.constant 0 : i32
    return %c0_i32, %arg1 : i32, i32
  }
  func.func @transform_6(%arg0: i32, %arg1: i32, %arg2: i32) -> (i32, i32) {
    %c0_i32 = arith.constant 0 : i32
    return %arg0, %arg1 : i32, i32
  }
}

</mosaic_0001>

<llo_original>
// kernel: tpu_custom_call.1
$region0: #{tpu_custom_call.1}
  #allocation0 [shape = 'u32[]', space=smem, size = 0x4, offset = 0x4, fixed_abs, tag = 'smem constant byte address 0x4 - core index']
  #allocation1 [shape = 'u32[72,128]{1,0:T(1,128)}', space=vmem, size = 0x9000, scoped, tag = 'internal scratch']
  #allocation2 [shape = 'f32[16,128]{1,0:T(8,128)}', space=vmem, size = 0x2000, scoped, tag = 'scratch operand']
  #allocation3 [shape = 'f32[128,128]{1,0:T(8,128)}', space=vmem, size = 0x10000, scoped, tag = 'scratch operand']
  #allocation16 [shape = 's32[]', space=sflag, size = 0x4, offset = 0, fixed_abs, tag = 'sflag constant byte address 0x0 - dummy sync flag']
  %s0 = inlined_call_operand.hbm [shape: f32[8], index: 0, kind: input, shape index: {}]
  %s1 = inlined_call_operand.hbm [shape: f32[16,256], index: 1, kind: input, shape index: {}]
  %s2 = inlined_call_operand.hbm [shape: f32[8,256,256], index: 2, kind: input, shape index: {}]
  %s3 = inlined_call_operand.hbm [shape: f32[256,256], index: 3, kind: input, shape index: {}]
  %s4 = inlined_call_operand.hbm [shape: f32[8,256], index: 4, kind: input, shape index: {}]
  %s5 = inlined_call_operand.hbm [shape: f32[1,256], index: 5, kind: input, shape index: {}]
  %s6 = inlined_call_operand.hbm [shape: f32[16,256], index: 6, kind: output, shape index: {}]
  %s7 = sld [smem:[#allocation0]]
  $region89: #{tpu_custom_call.1} parent=0
    _
  %s9 = ssub.s32 1, %s7
  %s10 = scalar_select 0, %s9, %s7
  $region1: #{tpu_custom_call.1} parent=0
    #allocation4 [shape = 'u8[512]{0}', space=smem, size = 0x200, scoped, tag = 'input window, operand 0, single buffered']
    #allocation5 [shape = 's32[2]{0}', space=sflag, size = 0x8, scoped, tag = 'scoped memory for tpu_custom_call.1']
    #allocation6 [shape = 's32[2]{0}', space=sflag, size = 0x8, scoped, tag = 'scoped memory for tpu_custom_call.1']
    #allocation7 [shape = 's32[2]{0}', space=sflag, size = 0x8, scoped, tag = 'scoped memory for tpu_custom_call.1']
    #allocation8 [shape = 'u8[16384]{0}', space=vmem, size = 0x4000, scoped, tag = 'input window, operand 1']
    #allocation9 [shape = 'u8[1048576]{0}', space=vmem, size = 0x100000, scoped, tag = 'input window, operand 2']
    #allocation10 [shape = 's32[2]{0}', space=sflag, size = 0x8, scoped, tag = 'scoped memory for tpu_custom_call.1']
    #allocation11 [shape = 'u8[131072]{0}', space=vmem, size = 0x20000, scoped, tag = 'input window, operand 3']
    #allocation12 [shape = 'u8[8192]{0}', space=vmem, size = 0x2000, scoped, tag = 'input window, operand 4']
    #allocation13 [shape = 's32[2]{0}', space=sflag, size = 0x8, scoped, tag = 'scoped memory for tpu_custom_call.1']
    #allocation14 [shape = 'u8[1024]{0}', space=vmem, size = 0x400, scoped, tag = 'input window, operand 5']
    #allocation15 [shape = 'u8[16384]{0}', space=vmem, size = 0x4000, scoped, tag = 'output window, operand 0']
    %11 = vsyncpa [#allocation7], 0
    %12 = vsyncpa [#allocation5], 0
    %s13 = scalar_lea.sflag [#allocation5], 1
    %14 = vsyncpa %s13, 0
    %15 = vsyncpa [#allocation10], 0
    %s16 = scalar_lea.sflag [#allocation10], 1
    %17 = vsyncpa %s16, 0
    %18 = vsyncpa [#allocation13], 0
    %s19 = scalar_lea.sflag [#allocation13], 1
    %20 = vsyncpa %s19, 0
    %21 = vsyncpa [#allocation6], 0
    %s22 = scalar_lea.sflag [#allocation6], 1
    %23 = vsyncpa %s22, 0
    loop: start=0, step=1, limit=6
    $region2: #{tpu_custom_call.1} parent=1 // loop_pre_header
      _
    $region3: #{tpu_custom_call.1} parent=1 // loop_header
      %s25 = sphi 0, %s29
      %p26 = scmp.ge.s32.totalorder %s25, 6
      %s32 = sphi 0, %s51
      %s33 = sphi 0, %s47
      %s34 = sphi 0, %s43
      %s35 = sphi 0, %s32
      %s36 = sphi 0, %s33
      %s37 = sphi 0, %s34
      %s38 = sphi 0, %s35
      %s39 = sphi 0, %s36
      %s40 = sphi 0, %s37
      %s52 = sphi 0, %s52
      %s54 = sphi 0, %s52
      %s55 = sphi 0, %s54
      %s69 = sphi 0, %s55
      %s77 = sphi 0, %s79
      %s80 = sphi 0, %s77
      %s81 = sphi 0, %s80
      %s97 = sphi 0, %s81
      %s105 = sphi 0, %s107
      %s108 = sphi 0, %s105
      %s109 = sphi 0, %s108
      %s125 = sphi 0, %s109
      %s133 = sphi 0, %s135
      %s136 = sphi 0, %s133
      %s137 = sphi 0, %s136
      %s153 = sphi 0, %s137
      %s159 = sphi 0, %s161
      %s162 = sphi 0, %s159
      %s163 = sphi 0, %s162
      %s179 = sphi 0, %s163
      %s185 = sphi 0, %s187
      %s188 = sphi 0, %s185
      %s189 = sphi 0, %s188
      %s205 = sphi 0, %s189
      %s213 = sphi 0, %s215
      %s216 = sphi 0, %s213
      %s217 = sphi 0, %s216
      %s233 = sphi 0, %s217
    $region4: #{tpu_custom_call.1} parent=1 // loop_header_branch
      %28 = sbr.rel (%p26) target = $region8
    $region5: #{tpu_custom_call.1} parent=1 // loop_body
      %s30 = ssub.s32 %s25, 1
      %s31 = ssub.s32 %s25, 2
      %s41 = sadd.s32 1, %s34
      %p42 = scmp.ge.s32.totalorder %s41, 2
      %s43 = scalar_select %p42, 0, %s41
      %s44 = sadd.s32 1, %s33
      %s45 = scalar_select %p42, %s44, %s33
      %p46 = scmp.ge.s32.totalorder %s45, 2
      %s47 = scalar_select %p46, 0, %s45
      %s48 = sadd.s32 1, %s32
      %s49 = scalar_select %p46, %s48, %s32
      %p50 = scmp.ge.s32.totalorder %s49, 1
      %s51 = scalar_select %p50, 0, %s49
      %s53 = sadd.s32 %s52, 1
      %p56 = scmp.eq.s32.totalorder %s25, 3
      %p57 = scmp.ne.s32.totalorder %s52, %s54
      %p58 = scmp.eq.s32.totalorder %s25, 0
      %p59 = por %p57, %p58
      %p60 = scmp.ne.s32.totalorder %s52, %s54
      %p61 = scmp.eq.s32.totalorder %s30, 3
      %p62 = por %p60, %p61
      %p63 = scmp.ne.s32.totalorder %s54, %s55
      %p64 = scmp.eq.s32.totalorder %s30, 0
      %p65 = por %p63, %p64
      %p66 = scmp.ne.s32.totalorder %s54, %s55
      %p67 = scmp.eq.s32.totalorder %s31, 3
      %p68 = por %p66, %p67
      %p70 = scmp.ne.s32.totalorder %s55, %s69
      %p71 = scmp.eq.s32.totalorder %s31, 0
      %p72 = por %p70, %p71
      %s73 = ssub.s32 %s32, %s51
      %s74 = ssub.s32 %s34, %s43
      %s75 = sor.u32 %s73, %s74
      %p76 = scmp.eq.s32.totalorder %s75, 0
      %s78 = sadd.s32 %s77, 1
      %s79 = scalar_select %p76, %s77, %s78
      %p82 = pneg %p76
      %p83 = scmp.eq.s32.totalorder %s25, 3
      %p84 = por %p82, %p83
      %p85 = scmp.ne.s32.totalorder %s77, %s80
      %p86 = scmp.eq.s32.totalorder %s25, 0
      %p87 = por %p85, %p86
      %p88 = scmp.ne.s32.totalorder %s77, %s80
      %p89 = scmp.eq.s32.totalorder %s30, 3
      %p90 = por %p88, %p89
      %p91 = scmp.ne.s32.totalorder %s80, %s81
      %p92 = scmp.eq.s32.totalorder %s30, 0
      %p93 = por %p91, %p92
      %p94 = scmp.ne.s32.totalorder %s80, %s81
      %p95 = scmp.eq.s32.totalorder %s31, 3
      %p96 = por %p94, %p95
      %p98 = scmp.ne.s32.totalorder %s81, %s97
      %p99 = scmp.eq.s32.totalorder %s31, 0
      %p100 = por %p98, %p99
      %s101 = ssub.s32 %s34, %s43
      %s102 = ssub.s32 %s33, %s47
      %s103 = sor.u32 %s101, %s102
      %p104 = scmp.eq.s32.totalorder %s103, 0
      %s106 = sadd.s32 %s105, 1
      %s107 = scalar_select %p104, %s105, %s106
      %p110 = pneg %p104
      %p111 = scmp.eq.s32.totalorder %s25, 3
      %p112 = por %p110, %p111
      %p113 = scmp.ne.s32.totalorder %s105, %s108
      %p114 = scmp.eq.s32.totalorder %s25, 0
      %p115 = por %p113, %p114
      %p116 = scmp.ne.s32.totalorder %s105, %s108
      %p117 = scmp.eq.s32.totalorder %s30, 3
      %p118 = por %p116, %p117
      %p119 = scmp.ne.s32.totalorder %s108, %s109
      %p120 = scmp.eq.s32.totalorder %s30, 0
      %p121 = por %p119, %p120
      %p122 = scmp.ne.s32.totalorder %s108, %s109
      %p123 = scmp.eq.s32.totalorder %s31, 3
      %p124 = por %p122, %p123
      %p126 = scmp.ne.s32.totalorder %s109, %s125
      %p127 = scmp.eq.s32.totalorder %s31, 0
      %p128 = por %p126, %p127
      %s129 = ssub.s32 %s34, %s43
      %s130 = ssub.s32 %s33, %s47
      %s131 = sor.u32 %s129, %s130
      %p132 = scmp.eq.s32.totalorder %s131, 0
      %s134 = sadd.s32 %s133, 1
      %s135 = scalar_select %p132, %s133, %s134
      %p138 = pneg %p132
      %p139 = scmp.eq.s32.totalorder %s25, 3
      %p140 = por %p138, %p139
      %p141 = scmp.ne.s32.totalorder %s133, %s136
      %p142 = scmp.eq.s32.totalorder %s25, 0
      %p143 = por %p141, %p142
      %p144 = scmp.ne.s32.totalorder %s133, %s136
      %p145 = scmp.eq.s32.totalorder %s30, 3
      %p146 = por %p144, %p145
      %p147 = scmp.ne.s32.totalorder %s136, %s137
      %p148 = scmp.eq.s32.totalorder %s30, 0
      %p149 = por %p147, %p148
      %p150 = scmp.ne.s32.totalorder %s136, %s137
      %p151 = scmp.eq.s32.totalorder %s31, 3
      %p152 = por %p150, %p151
      %p154 = scmp.ne.s32.totalorder %s137, %s153
      %p155 = scmp.eq.s32.totalorder %s31, 0
      %p156 = por %p154, %p155
      %s157 = ssub.s32 %s33, %s47
      %p158 = scmp.eq.s32.totalorder %s157, 0
      %s160 = sadd.s32 %s159, 1
      %s161 = scalar_select %p158, %s159, %s160
      %p164 = pneg %p158
      %p165 = scmp.eq.s32.totalorder %s25, 3
      %p166 = por %p164, %p165
      %p167 = scmp.ne.s32.totalorder %s159, %s162
      %p168 = scmp.eq.s32.totalorder %s25, 0
      %p169 = por %p167, %p168
      %p170 = scmp.ne.s32.totalorder %s159, %s162
      %p171 = scmp.eq.s32.totalorder %s30, 3
      %p172 = por %p170, %p171
      %p173 = scmp.ne.s32.totalorder %s162, %s163
      %p174 = scmp.eq.s32.totalorder %s30, 0
      %p175 = por %p173, %p174
      %p176 = scmp.ne.s32.totalorder %s162, %s163
      %p177 = scmp.eq.s32.totalorder %s31, 3
      %p178 = por %p176, %p177
      %p180 = scmp.ne.s32.totalorder %s163, %s179
      %p181 = scmp.eq.s32.totalorder %s31, 0
      %p182 = por %p180, %p181
      %s183 = ssub.s32 %s33, %s47
      %p184 = scmp.eq.s32.totalorder %s183, 0
      %s186 = sadd.s32 %s185, 1
      %s187 = scalar_select %p184, %s185, %s186
      %p190 = pneg %p184
      %p191 = scmp.eq.s32.totalorder %s25, 3
      %p192 = por %p190, %p191
      %p193 = scmp.ne.s32.totalorder %s185, %s188
      %p194 = scmp.eq.s32.totalorder %s25, 0
      %p195 = por %p193, %p194
      %p196 = scmp.ne.s32.totalorder %s185, %s188
      %p197 = scmp.eq.s32.totalorder %s30, 3
      %p198 = por %p196, %p197
      %p199 = scmp.ne.s32.totalorder %s188, %s189
      %p200 = scmp.eq.s32.totalorder %s30, 0
      %p201 = por %p199, %p200
      %p202 = scmp.ne.s32.totalorder %s188, %s189
      %p203 = scmp.eq.s32.totalorder %s31, 3
      %p204 = por %p202, %p203
      %p206 = scmp.ne.s32.totalorder %s189, %s205
      %p207 = scmp.eq.s32.totalorder %s31, 0
      %p208 = por %p206, %p207
      %s209 = ssub.s32 %s32, %s51
      %s210 = ssub.s32 %s33, %s47
      %s211 = sor.u32 %s209, %s210
      %p212 = scmp.eq.s32.totalorder %s211, 0
      %s214 = sadd.s32 %s213, 1
      %s215 = scalar_select %p212, %s213, %s214
      %p218 = pneg %p212
      %p219 = scmp.eq.s32.totalorder %s25, 3
      %p220 = por %p218, %p219
      %p221 = scmp.ne.s32.totalorder %s213, %s216
      %p222 = scmp.eq.s32.totalorder %s25, 0
      %p223 = por %p221, %p222
      %p224 = scmp.ne.s32.totalorder %s213, %s216
      %p225 = scmp.eq.s32.totalorder %s30, 3
      %p226 = por %p224, %p225
      %p227 = scmp.ne.s32.totalorder %s216, %s217
      %p228 = scmp.eq.s32.totalorder %s30, 0
      %p229 = por %p227, %p228
      %p230 = scmp.ne.s32.totalorder %s216, %s217
      %p231 = scmp.eq.s32.totalorder %s31, 3
      %p232 = por %p230, %p231
      %p234 = scmp.ne.s32.totalorder %s217, %s233
      %p235 = scmp.eq.s32.totalorder %s31, 0
      %p236 = por %p234, %p235
      %p237 = scmp.le.s32.totalorder 1, %s25
      %p238 = scmp.lt.s32.totalorder %s25, 5
      %p239 = pnand %p237, %p238
      %p240 = pneg %p239
      // Predicated region
      $region9: #{tpu_custom_call.1} parent=5 // pred_check
        _
      $region10: #{tpu_custom_call.1} parent=5 // pred_check_branch
        %242 = sbr.rel (%p239) target = $region12
      $region11: #{tpu_custom_call.1} parent=5 // pred_region
        %s243 = ssub.s32 %s25, 1
        // Predicated region
        $region13: #{tpu_custom_call.1} parent=11 // pred_check
          %p244 = pneg %p65
        $region14: #{tpu_custom_call.1} parent=11 // pred_check_branch
          %246 = sbr.rel (%p244) target = $region16
        $region15: #{tpu_custom_call.1} parent=11 // pred_region
          %248 = vsyncadd [#allocation7], 0
          %s250 = sshll.u32 %s0, 4
          %s251 = int_to_ptr.hbm [resolvable:$true] %s250
          %253 = dma.hbm_to_smem %s251, 16, [#allocation4], [#allocation7]
        $region16: #{tpu_custom_call.1} parent=11 // pred_fallthru
          _
      $region12: #{tpu_custom_call.1} parent=5 // pred_fallthru
        _
      %p254 = scmp.lt.s32.totalorder %s25, 4
      // Predicated region
      $region17: #{tpu_custom_call.1} parent=5 // pred_check
        %p255 = pneg %p254
      $region18: #{tpu_custom_call.1} parent=5 // pred_check_branch
        %257 = sbr.rel (%p255) target = $region20
      $region19: #{tpu_custom_call.1} parent=5 // pred_region
        // Predicated region
        $region21: #{tpu_custom_call.1} parent=19 // pred_check
          %p258 = pneg %p87
        $region22: #{tpu_custom_call.1} parent=19 // pred_check_branch
          %260 = sbr.rel (%p258) target = $region24
        $region23: #{tpu_custom_call.1} parent=19 // pred_region
          %s261 = sand.u32 %s77, 1
          %s262 = scalar_lea.sflag [#allocation5], %s261
          %s263 = sand.u32 %s77, 1
          %s264 = smul.addr %s263, 16
          %s265 = scalar_lea.vmem [#allocation8], %s264
          %s266 = smul.u32 2, %s32
          %268 = vsyncadd %s262, 0
          %s269 = smul.addr %s266, 2
          %s270 = sadd.s32 %s34, %s269
          %s271 = smul.addr %s270, 8
          %s272 = scalar_lea.hbm %s1, %s271
          %s273 = sshll.u32 %s272, 4
          %s274 = int_to_ptr.hbm [resolvable:$true] %s273
          %s275 = sshll.u32 %s265, 4
          %s276 = int_to_ptr.vmem [resolvable:$true] %s275
          %281 = dma.hbm_to_vmem [thread:$0]  %s274, 256, %s276, %s262, 256, 128, 8
        $region24: #{tpu_custom_call.1} parent=19 // pred_fallthru
          _
        // Predicated region
        $region25: #{tpu_custom_call.1} parent=19 // pred_check
          %p282 = pneg %p115
        $region26: #{tpu_custom_call.1} parent=19 // pred_check_branch
          %284 = sbr.rel (%p282) target = $region28
        $region27: #{tpu_custom_call.1} parent=19 // pred_region
          #allocation17 [shape = 'u32[6]{0}', space=smem, size = 0x18, scoped, tag = 'DMA stride descriptor']
          %s285 = sand.u32 %s25, 1
          %s286 = scalar_lea.sflag [#allocation10], %s285
          %s287 = sand.u32 %s105, 1
          %s288 = smul.addr %s287, 1024
          %s289 = scalar_lea.vmem [#allocation9], %s288
          %s290 = smul.u32 16, %s34
          %292 = vsyncadd %s286, 0
          %s293 = smul.addr %s290, 2
          %s294 = sadd.s32 %s33, %s293
          %s295 = smul.addr %s294, 8
          %s296 = scalar_lea.hbm %s2, %s295
          %s298 = sshll.u32 1, 14
          %s299 = sxor.u32 4294967295, %s298
          %s301 = sld [smem:[#allocation0]]
          %s302 = sadd.s32 2, %s301
          %s304 = sshll.u32 7, 26
          %s305 = sxor.u32 4294967295, %s304
          %s306 = sand.u32 0, %s305
          %s307 = sshll.u32 %s302, 26
          %s308 = sor.u32 %s306, %s307
          %s309 = sshll.u32 %s296, 4
          %s310 = int_to_ptr.hbm [resolvable:$true] %s309
          %s311 = sshll.u32 %s289, 4
          %s312 = int_to_ptr.vmem [resolvable:$true] %s311
          %318 = sst [smem:[#allocation17]] 8192
          %s319 = scalar_lea.smem [#allocation17], 1
          %320 = sst [smem:[%s319]] 2048
          %s321 = scalar_lea.smem [#allocation17], 2
          %322 = sst [smem:[%s321]] 16
          %s323 = scalar_lea.smem [#allocation17], 3
          %324 = sst [smem:[%s323]] 256
          %s325 = scalar_lea.smem [#allocation17], 4
          %326 = sst [smem:[%s325]] 128
          %s327 = scalar_lea.smem [#allocation17], 5
          %328 = sst [smem:[%s327]] 8
          %330 = dma.general %s310, 16384, %s312, %s286, [#allocation16], [#allocation17], %s308, 0
        $region28: #{tpu_custom_call.1} parent=19 // pred_fallthru
          _
        // Predicated region
        $region29: #{tpu_custom_call.1} parent=19 // pred_check
          %p331 = pneg %p143
        $region30: #{tpu_custom_call.1} parent=19 // pred_check_branch
          %333 = sbr.rel (%p331) target = $region32
        $region31: #{tpu_custom_call.1} parent=19 // pred_region
          %s334 = sand.u32 %s25, 1
          %s335 = scalar_lea.sflag [#allocation10], %s334
          %s336 = sand.u32 %s133, 1
          %s337 = smul.addr %s336, 128
          %s338 = scalar_lea.vmem [#allocation11], %s337
          %s339 = smul.u32 16, %s34
          %341 = vsyncadd %s335, 0
          %s342 = smul.addr %s339, 2
          %s343 = sadd.s32 %s33, %s342
          %s344 = smul.addr %s343, 8
          %s345 = scalar_lea.hbm %s3, %s344
          %s346 = sshll.u32 %s345, 4
          %s347 = int_to_ptr.hbm [resolvable:$true] %s346
          %s348 = sshll.u32 %s338, 4
          %s349 = int_to_ptr.vmem [resolvable:$true] %s348
          %354 = dma.hbm_to_vmem [thread:$0]  %s347, 2048, %s349, %s335, 256, 128, 8
        $region32: #{tpu_custom_call.1} parent=19 // pred_fallthru
          _
        // Predicated region
        $region33: #{tpu_custom_call.1} parent=19 // pred_check
          %p355 = pneg %p169
        $region34: #{tpu_custom_call.1} parent=19 // pred_check_branch
          %357 = sbr.rel (%p355) target = $region36
        $region35: #{tpu_custom_call.1} parent=19 // pred_region
          %s358 = sand.u32 %s25, 1
          %s359 = scalar_lea.sflag [#allocation13], %s358
          %s360 = sand.u32 %s159, 1
          %s361 = smul.addr %s360, 8
          %s362 = scalar_lea.vmem [#allocation12], %s361
          %364 = vsyncadd %s359, 0
          %s365 = smul.addr %s33, 8
          %s366 = scalar_lea.hbm %s4, %s365
          %s368 = sshll.u32 %s366, 4
          %s369 = int_to_ptr.hbm [resolvable:$true] %s368
          %s370 = sshll.u32 %s362, 4
          %s371 = int_to_ptr.vmem [resolvable:$true] %s370
          %373 = dma.hbm_to_vmem [thread:$0]  %s369, 128, %s371, %s359
        $region36: #{tpu_custom_call.1} parent=19 // pred_fallthru
          _
        // Predicated region
        $region37: #{tpu_custom_call.1} parent=19 // pred_check
          %p374 = pneg %p195
        $region38: #{tpu_custom_call.1} parent=19 // pred_check_branch
          %376 = sbr.rel (%p374) target = $region40
        $region39: #{tpu_custom_call.1} parent=19 // pred_region
          %s377 = sand.u32 %s25, 1
          %s378 = scalar_lea.sflag [#allocation13], %s377
          %s379 = sand.u32 %s185, 1
          %s380 = scalar_lea.vmem [#allocation14], %s379
          %382 = vsyncadd %s378, 0
          %s383 = scalar_lea.hbm %s5, %s33
          %s385 = sshll.u32 %s383, 4
          %s386 = int_to_ptr.hbm [resolvable:$true] %s385
          %s387 = sshll.u32 %s380, 4
          %s388 = int_to_ptr.vmem [resolvable:$true] %s387
          %390 = dma.hbm_to_vmem [thread:$0]  %s386, 16, %s388, %s378
        $region40: #{tpu_custom_call.1} parent=19 // pred_fallthru
          _
      $region20: #{tpu_custom_call.1} parent=5 // pred_fallthru
        _
      %p391 = scmp.le.s32.totalorder 1, %s25
      %p392 = scmp.lt.s32.totalorder %s25, 5
      %p393 = pnand %p391, %p392
      %p394 = pneg %p393
      // Predicated region
      $region41: #{tpu_custom_call.1} parent=5 // pred_check
        _
      $region42: #{tpu_custom_call.1} parent=5 // pred_check_branch
        %396 = sbr.rel (%p393) target = $region44
      $region43: #{tpu_custom_call.1} parent=5 // pred_region
        %s397 = ssub.s32 %s25, 1
        // Predicated region
        $region45: #{tpu_custom_call.1} parent=43 // pred_check
          %p398 = pneg %p65
        $region46: #{tpu_custom_call.1} parent=43 // pred_check_branch
          %400 = sbr.rel (%p398) target = $region48
        $region47: #{tpu_custom_call.1} parent=43 // pred_region
          %402 = dma.done [#allocation7], 16
        $region48: #{tpu_custom_call.1} parent=43 // pred_fallthru
          _
        %s403 = sand.u32 %s80, 1
        %s404 = scalar_lea.sflag [#allocation5], %s403
        %s405 = sand.u32 %s80, 1
        %s406 = smul.addr %s405, 16
        %s407 = scalar_lea.vmem [#allocation8], %s406
        // Predicated region
        $region49: #{tpu_custom_call.1} parent=43 // pred_check
          %p408 = pneg %p93
        $region50: #{tpu_custom_call.1} parent=43 // pred_check_branch
          %410 = sbr.rel (%p408) target = $region52
        $region51: #{tpu_custom_call.1} parent=43 // pred_region
          %412 = dma.done %s404, 256
        $region52: #{tpu_custom_call.1} parent=43 // pred_fallthru
          _
        %s413 = sand.u32 %s30, 1
        %s414 = scalar_lea.sflag [#allocation10], %s413
        %s415 = sand.u32 %s108, 1
        %s416 = smul.addr %s415, 1024
        %s417 = scalar_lea.vmem [#allocation9], %s416
        // Predicated region
        $region53: #{tpu_custom_call.1} parent=43 // pred_check
          %p418 = pneg %p121
        $region54: #{tpu_custom_call.1} parent=43 // pred_check_branch
          %420 = sbr.rel (%p418) target = $region56
        $region55: #{tpu_custom_call.1} parent=43 // pred_region
          %422 = dma.done %s414, 16384
        $region56: #{tpu_custom_call.1} parent=43 // pred_fallthru
          _
        %s423 = sand.u32 %s30, 1
        %s424 = scalar_lea.sflag [#allocation10], %s423
        %s425 = sand.u32 %s136, 1
        %s426 = smul.addr %s425, 128
        %s427 = scalar_lea.vmem [#allocation11], %s426
        // Predicated region
        $region57: #{tpu_custom_call.1} parent=43 // pred_check
          %p428 = pneg %p149
        $region58: #{tpu_custom_call.1} parent=43 // pred_check_branch
          %430 = sbr.rel (%p428) target = $region60
        $region59: #{tpu_custom_call.1} parent=43 // pred_region
          %432 = dma.done %s424, 2048
        $region60: #{tpu_custom_call.1} parent=43 // pred_fallthru
          _
        %s433 = sand.u32 %s30, 1
        %s434 = scalar_lea.sflag [#allocation13], %s433
        %s435 = sand.u32 %s162, 1
        %s436 = smul.addr %s435, 8
        %s437 = scalar_lea.vmem [#allocation12], %s436
        // Predicated region
        $region61: #{tpu_custom_call.1} parent=43 // pred_check
          %p438 = pneg %p175
        $region62: #{tpu_custom_call.1} parent=43 // pred_check_branch
          %440 = sbr.rel (%p438) target = $region64
        $region63: #{tpu_custom_call.1} parent=43 // pred_region
          %442 = dma.done %s434, 128
        $region64: #{tpu_custom_call.1} parent=43 // pred_fallthru
          _
        %s443 = sand.u32 %s30, 1
        %s444 = scalar_lea.sflag [#allocation13], %s443
        %s445 = sand.u32 %s188, 1
        %s446 = scalar_lea.vmem [#allocation14], %s445
        // Predicated region
        $region65: #{tpu_custom_call.1} parent=43 // pred_check
          %p447 = pneg %p201
        $region66: #{tpu_custom_call.1} parent=43 // pred_check_branch
          %449 = sbr.rel (%p447) target = $region68
        $region67: #{tpu_custom_call.1} parent=43 // pred_region
          %451 = dma.done %s444, 16
        $region68: #{tpu_custom_call.1} parent=43 // pred_fallthru
          _
        %452 = sfence
        %p453 = pneg %p65
        %p454 = pneg %p62
        %s455 = sand.u32 %s80, 1
        %s456 = scalar_lea.sflag [#allocation5], %s455
        %s457 = sand.u32 %s80, 1
        %s458 = smul.addr %s457, 16
        %s459 = scalar_lea.vmem [#allocation8], %s458
        %p460 = pneg %p93
        %p461 = pneg %p90
        %s462 = sand.u32 %s30, 1
        %s463 = scalar_lea.sflag [#allocation10], %s462
        %s464 = sand.u32 %s108, 1
        %s465 = smul.addr %s464, 1024
        %s466 = scalar_lea.vmem [#allocation9], %s465
        %p467 = pneg %p121
        %p468 = pneg %p118
        %s469 = sand.u32 %s30, 1
        %s470 = scalar_lea.sflag [#allocation10], %s469
        %s471 = sand.u32 %s136, 1
        %s472 = smul.addr %s471, 128
        %s473 = scalar_lea.vmem [#allocation11], %s472
        %p474 = pneg %p149
        %p475 = pneg %p146
        %s476 = sand.u32 %s30, 1
        %s477 = scalar_lea.sflag [#allocation13], %s476
        %s478 = sand.u32 %s162, 1
        %s479 = smul.addr %s478, 8
        %s480 = scalar_lea.vmem [#allocation12], %s479
        %p481 = pneg %p175
        %p482 = pneg %p172
        %s483 = sand.u32 %s30, 1
        %s484 = scalar_lea.sflag [#allocation13], %s483
        %s485 = sand.u32 %s188, 1
        %s486 = scalar_lea.vmem [#allocation14], %s485
        %p487 = pneg %p201
        %p488 = pneg %p198
        %p489 = pneg %p229
        %p490 = pneg %p226
        %s491 = sand.u32 %s216, 1
        %s492 = scalar_lea.sflag [#allocation6], %s491
        %s493 = sand.u32 %s216, 1
        %s494 = smul.addr %s493, 16
        %s495 = scalar_lea.vmem [#allocation15], %s494
        %s496 = smul.u32 2, %s35
        %s497 = smul.u32 16, %s37
        %s498 = smul.u32 16, %s37
        %s499 = smul.u32 2, %s35
        %p500 = scmp.eq.s32.totalorder %s37, 0
        // Predicated region
        $region69: #{tpu_custom_call.1} parent=43 // pred_check
          %p501 = pneg %p500
        $region70: #{tpu_custom_call.1} parent=43 // pred_check_branch
          %503 = sbr.rel (%p501) target = $region72
        $region71: #{tpu_custom_call.1} parent=43 // pred_region
          %504 = vst [vmem:[#allocation2] sm:$0xff] 0.0
          %505 = vst [vmem:[#allocation2 + $0x8] sm:$0xff] 0.0
        $region72: #{tpu_custom_call.1} parent=43 // pred_fallthru
          _
        %v506 = vld [vmem:[%s427] sm:$0xff]
        %v507 = vld [vmem:[%s427 + $0x8] sm:$0xff]
        %v508 = vld [vmem:[%s427 + $0x10] sm:$0xff]
        %v509 = vld [vmem:[%s427 + $0x18] sm:$0xff]
        %v510 = vld [vmem:[%s427 + $0x20] sm:$0xff]
        %v511 = vld [vmem:[%s427 + $0x28] sm:$0xff]
        %v512 = vld [vmem:[%s427 + $0x30] sm:$0xff]
        %v513 = vld [vmem:[%s427 + $0x38] sm:$0xff]
        %v514 = vld [vmem:[%s427 + $0x40] sm:$0xff]
        %v515 = vld [vmem:[%s427 + $0x48] sm:$0xff]
        %v516 = vld [vmem:[%s427 + $0x50] sm:$0xff]
        %v517 = vld [vmem:[%s427 + $0x58] sm:$0xff]
        %v518 = vld [vmem:[%s427 + $0x60] sm:$0xff]
        %v519 = vld [vmem:[%s427 + $0x68] sm:$0xff]
        %v520 = vld [vmem:[%s427 + $0x70] sm:$0xff]
        %v521 = vld [vmem:[%s427 + $0x78] sm:$0xff]
        %s522 = sld [smem:[#allocation4]]
        %v523 = vld [vmem:[%s417] sm:$0xff]
        %v524 = vld [vmem:[%s417 + $0x8] sm:$0xff]
        %v525 = vld [vmem:[%s417 + $0x10] sm:$0xff]
        %v526 = vld [vmem:[%s417 + $0x18] sm:$0xff]
        %v527 = vld [vmem:[%s417 + $0x20] sm:$0xff]
        %v528 = vld [vmem:[%s417 + $0x28] sm:$0xff]
        %v529 = vld [vmem:[%s417 + $0x30] sm:$0xff]
        %v530 = vld [vmem:[%s417 + $0x38] sm:$0xff]
        %v531 = vld [vmem:[%s417 + $0x40] sm:$0xff]
        %v532 = vld [vmem:[%s417 + $0x48] sm:$0xff]
        %v533 = vld [vmem:[%s417 + $0x50] sm:$0xff]
        %v534 = vld [vmem:[%s417 + $0x58] sm:$0xff]
        %v535 = vld [vmem:[%s417 + $0x60] sm:$0xff]
        %v536 = vld [vmem:[%s417 + $0x68] sm:$0xff]
        %v537 = vld [vmem:[%s417 + $0x70] sm:$0xff]
        %v538 = vld [vmem:[%s417 + $0x78] sm:$0xff]
        %v539 = vstv %s522
        %v540 = vmul.f32 %v539, %v523
        %v541 = vmul.f32 %v539, %v524
        %v542 = vmul.f32 %v539, %v525
        %v543 = vmul.f32 %v539, %v526
        %v544 = vmul.f32 %v539, %v527
        %v545 = vmul.f32 %v539, %v528
        %v546 = vmul.f32 %v539, %v529
        %v547 = vmul.f32 %v539, %v530
        %v548 = vmul.f32 %v539, %v531
        %v549 = vmul.f32 %v539, %v532
        %v550 = vmul.f32 %v539, %v533
        %v551 = vmul.f32 %v539, %v534
        %v552 = vmul.f32 %v539, %v535
        %v553 = vmul.f32 %v539, %v536
        %v554 = vmul.f32 %v539, %v537
        %v555 = vmul.f32 %v539, %v538
        %v556 = vadd.f32 %v506, %v540
        %v557 = vadd.f32 %v507, %v541
        %v558 = vadd.f32 %v508, %v542
        %v559 = vadd.f32 %v509, %v543
        %v560 = vadd.f32 %v510, %v544
        %v561 = vadd.f32 %v511, %v545
        %v562 = vadd.f32 %v512, %v546
        %v563 = vadd.f32 %v513, %v547
        %v564 = vadd.f32 %v514, %v548
        %v565 = vadd.f32 %v515, %v549
        %v566 = vadd.f32 %v516, %v550
        %v567 = vadd.f32 %v517, %v551
        %v568 = vadd.f32 %v518, %v552
        %v569 = vadd.f32 %v519, %v553
        %v570 = vadd.f32 %v520, %v554
        %v571 = vadd.f32 %v521, %v555
        %s572 = sld [smem:[#allocation4 + $0x1]]
        %s573 = scalar_lea.vmem %s417, 128 [#allocation9]
        %v574 = vld [vmem:[%s573] sm:$0xff]
        %v575 = vld [vmem:[%s573 + $0x8] sm:$0xff]
        %v576 = vld [vmem:[%s573 + $0x10] sm:$0xff]
        %v577 = vld [vmem:[%s573 + $0x18] sm:$0xff]
        %v578 = vld [vmem:[%s573 + $0x20] sm:$0xff]
        %v579 = vld [vmem:[%s573 + $0x28] sm:$0xff]
        %v580 = vld [vmem:[%s573 + $0x30] sm:$0xff]
        %v581 = vld [vmem:[%s573 + $0x38] sm:$0xff]
        %v582 = vld [vmem:[%s573 + $0x40] sm:$0xff]
        %v583 = vld [vmem:[%s573 + $0x48] sm:$0xff]
        %v584 = vld [vmem:[%s573 + $0x50] sm:$0xff]
        %v585 = vld [vmem:[%s573 + $0x58] sm:$0xff]
        %v586 = vld [vmem:[%s573 + $0x60] sm:$0xff]
        %v587 = vld [vmem:[%s573 + $0x68] sm:$0xff]
        %v588 = vld [vmem:[%s573 + $0x70] sm:$0xff]
        %v589 = vld [vmem:[%s573 + $0x78] sm:$0xff]
        %v590 = vstv %s572
        %v591 = vmul.f32 %v590, %v574
        %v592 = vmul.f32 %v590, %v575
        %v593 = vmul.f32 %v590, %v576
        %v594 = vmul.f32 %v590, %v577
        %v595 = vmul.f32 %v590, %v578
        %v596 = vmul.f32 %v590, %v579
        %v597 = vmul.f32 %v590, %v580
        %v598 = vmul.f32 %v590, %v581
        %v599 = vmul.f32 %v590, %v582
        %v600 = vmul.f32 %v590, %v583
        %v601 = vmul.f32 %v590, %v584
        %v602 = vmul.f32 %v590, %v585
        %v603 = vmul.f32 %v590, %v586
        %v604 = vmul.f32 %v590, %v587
        %v605 = vmul.f32 %v590, %v588
        %v606 = vmul.f32 %v590, %v589
        %v607 = vadd.f32 %v556, %v591
        %v608 = vadd.f32 %v557, %v592
        %v609 = vadd.f32 %v558, %v593
        %v610 = vadd.f32 %v559, %v594
        %v611 = vadd.f32 %v560, %v595
        %v612 = vadd.f32 %v561, %v596
        %v613 = vadd.f32 %v562, %v597
        %v614 = vadd.f32 %v563, %v598
        %v615 = vadd.f32 %v564, %v599
        %v616 = vadd.f32 %v565, %v600
        %v617 = vadd.f32 %v566, %v601
        %v618 = vadd.f32 %v567, %v602
        %v619 = vadd.f32 %v568, %v603
        %v620 = vadd.f32 %v569, %v604
        %v621 = vadd.f32 %v570, %v605
        %v622 = vadd.f32 %v571, %v606
        %s623 = sld [smem:[#allocation4 + $0x2]]
        %s624 = scalar_lea.vmem %s417, 256 [#allocation9]
        %v625 = vld [vmem:[%s624] sm:$0xff]
        %v626 = vld [vmem:[%s624 + $0x8] sm:$0xff]
        %v627 = vld [vmem:[%s624 + $0x10] sm:$0xff]
        %v628 = vld [vmem:[%s624 + $0x18] sm:$0xff]
        %v629 = vld [vmem:[%s624 + $0x20] sm:$0xff]
        %v630 = vld [vmem:[%s624 + $0x28] sm:$0xff]
        %v631 = vld [vmem:[%s624 + $0x30] sm:$0xff]
        %v632 = vld [vmem:[%s624 + $0x38] sm:$0xff]
        %v633 = vld [vmem:[%s624 + $0x40] sm:$0xff]
        %v634 = vld [vmem:[%s624 + $0x48] sm:$0xff]
        %v635 = vld [vmem:[%s624 + $0x50] sm:$0xff]
        %v636 = vld [vmem:[%s624 + $0x58] sm:$0xff]
        %v637 = vld [vmem:[%s624 + $0x60] sm:$0xff]
        %v638 = vld [vmem:[%s624 + $0x68] sm:$0xff]
        %v639 = vld [vmem:[%s624 + $0x70] sm:$0xff]
        %v640 = vld [vmem:[%s624 + $0x78] sm:$0xff]
        %v641 = vstv %s623
        %v642 = vmul.f32 %v641, %v625
        %v643 = vmul.f32 %v641, %v626
        %v644 = vmul.f32 %v641, %v627
        %v645 = vmul.f32 %v641, %v628
        %v646 = vmul.f32 %v641, %v629
        %v647 = vmul.f32 %v641, %v630
        %v648 = vmul.f32 %v641, %v631
        %v649 = vmul.f32 %v641, %v632
        %v650 = vmul.f32 %v641, %v633
        %v651 = vmul.f32 %v641, %v634
        %v652 = vmul.f32 %v641, %v635
        %v653 = vmul.f32 %v641, %v636
        %v654 = vmul.f32 %v641, %v637
        %v655 = vmul.f32 %v641, %v638
        %v656 = vmul.f32 %v641, %v639
        %v657 = vmul.f32 %v641, %v640
        %v658 = vadd.f32 %v607, %v642
        %v659 = vadd.f32 %v608, %v643
        %v660 = vadd.f32 %v609, %v644
        %v661 = vadd.f32 %v610, %v645
        %v662 = vadd.f32 %v611, %v646
        %v663 = vadd.f32 %v612, %v647
        %v664 = vadd.f32 %v613, %v648
        %v665 = vadd.f32 %v614, %v649
        %v666 = vadd.f32 %v615, %v650
        %v667 = vadd.f32 %v616, %v651
        %v668 = vadd.f32 %v617, %v652
        %v669 = vadd.f32 %v618, %v653
        %v670 = vadd.f32 %v619, %v654
        %v671 = vadd.f32 %v620, %v655
        %v672 = vadd.f32 %v621, %v656
        %v673 = vadd.f32 %v622, %v657
        %s674 = sld [smem:[#allocation4 + $0x3]]
        %s675 = scalar_lea.vmem %s417, 384 [#allocation9]
        %v676 = vld [vmem:[%s675] sm:$0xff]
        %v677 = vld [vmem:[%s675 + $0x8] sm:$0xff]
        %v678 = vld [vmem:[%s675 + $0x10] sm:$0xff]
        %v679 = vld [vmem:[%s675 + $0x18] sm:$0xff]
        %v680 = vld [vmem:[%s675 + $0x20] sm:$0xff]
        %v681 = vld [vmem:[%s675 + $0x28] sm:$0xff]
        %v682 = vld [vmem:[%s675 + $0x30] sm:$0xff]
        %v683 = vld [vmem:[%s675 + $0x38] sm:$0xff]
        %v684 = vld [vmem:[%s675 + $0x40] sm:$0xff]
        %v685 = vld [vmem:[%s675 + $0x48] sm:$0xff]
        %v686 = vld [vmem:[%s675 + $0x50] sm:$0xff]
        %v687 = vld [vmem:[%s675 + $0x58] sm:$0xff]
        %v688 = vld [vmem:[%s675 + $0x60] sm:$0xff]
        %v689 = vld [vmem:[%s675 + $0x68] sm:$0xff]
        %v690 = vld [vmem:[%s675 + $0x70] sm:$0xff]
        %v691 = vld [vmem:[%s675 + $0x78] sm:$0xff]
        %v692 = vstv %s674
        %v693 = vmul.f32 %v692, %v676
        %v694 = vmul.f32 %v692, %v677
        %v695 = vmul.f32 %v692, %v678
        %v696 = vmul.f32 %v692, %v679
        %v697 = vmul.f32 %v692, %v680
        %v698 = vmul.f32 %v692, %v681
        %v699 = vmul.f32 %v692, %v682
        %v700 = vmul.f32 %v692, %v683
        %v701 = vmul.f32 %v692, %v684
        %v702 = vmul.f32 %v692, %v685
        %v703 = vmul.f32 %v692, %v686
        %v704 = vmul.f32 %v692, %v687
        %v705 = vmul.f32 %v692, %v688
        %v706 = vmul.f32 %v692, %v689
        %v707 = vmul.f32 %v692, %v690
        %v708 = vmul.f32 %v692, %v691
        %v709 = vadd.f32 %v658, %v693
        %v710 = vadd.f32 %v659, %v694
        %v711 = vadd.f32 %v660, %v695
        %v712 = vadd.f32 %v661, %v696
        %v713 = vadd.f32 %v662, %v697
        %v714 = vadd.f32 %v663, %v698
        %v715 = vadd.f32 %v664, %v699
        %v716 = vadd.f32 %v665, %v700
        %v717 = vadd.f32 %v666, %v701
        %v718 = vadd.f32 %v667, %v702
        %v719 = vadd.f32 %v668, %v703
        %v720 = vadd.f32 %v669, %v704
        %v721 = vadd.f32 %v670, %v705
        %v722 = vadd.f32 %v671, %v706
        %v723 = vadd.f32 %v672, %v707
        %v724 = vadd.f32 %v673, %v708
        %s725 = sld [smem:[#allocation4 + $0x4]]
        %s726 = scalar_lea.vmem %s417, 512 [#allocation9]
        %v727 = vld [vmem:[%s726] sm:$0xff]
        %v728 = vld [vmem:[%s726 + $0x8] sm:$0xff]
        %v729 = vld [vmem:[%s726 + $0x10] sm:$0xff]
        %v730 = vld [vmem:[%s726 + $0x18] sm:$0xff]
        %v731 = vld [vmem:[%s726 + $0x20] sm:$0xff]
        %v732 = vld [vmem:[%s726 + $0x28] sm:$0xff]
        %v733 = vld [vmem:[%s726 + $0x30] sm:$0xff]
        %v734 = vld [vmem:[%s726 + $0x38] sm:$0xff]
        %v735 = vld [vmem:[%s726 + $0x40] sm:$0xff]
        %v736 = vld [vmem:[%s726 + $0x48] sm:$0xff]
        %v737 = vld [vmem:[%s726 + $0x50] sm:$0xff]
        %v738 = vld [vmem:[%s726 + $0x58] sm:$0xff]
        %v739 = vld [vmem:[%s726 + $0x60] sm:$0xff]
        %v740 = vld [vmem:[%s726 + $0x68] sm:$0xff]
        %v741 = vld [vmem:[%s726 + $0x70] sm:$0xff]
        %v742 = vld [vmem:[%s726 + $0x78] sm:$0xff]
        %v743 = vstv %s725
        %v744 = vmul.f32 %v743, %v727
        %v745 = vmul.f32 %v743, %v728
        %v746 = vmul.f32 %v743, %v729
        %v747 = vmul.f32 %v743, %v730
        %v748 = vmul.f32 %v743, %v731
        %v749 = vmul.f32 %v743, %v732
        %v750 = vmul.f32 %v743, %v733
        %v751 = vmul.f32 %v743, %v734
        %v752 = vmul.f32 %v743, %v735
        %v753 = vmul.f32 %v743, %v736
        %v754 = vmul.f32 %v743, %v737
        %v755 = vmul.f32 %v743, %v738
        %v756 = vmul.f32 %v743, %v739
        %v757 = vmul.f32 %v743, %v740
        %v758 = vmul.f32 %v743, %v741
        %v759 = vmul.f32 %v743, %v742
        %v760 = vadd.f32 %v709, %v744
        %v761 = vadd.f32 %v710, %v745
        %v762 = vadd.f32 %v711, %v746
        %v763 = vadd.f32 %v712, %v747
        %v764 = vadd.f32 %v713, %v748
        %v765 = vadd.f32 %v714, %v749
        %v766 = vadd.f32 %v715, %v750
        %v767 = vadd.f32 %v716, %v751
        %v768 = vadd.f32 %v717, %v752
        %v769 = vadd.f32 %v718, %v753
        %v770 = vadd.f32 %v719, %v754
        %v771 = vadd.f32 %v720, %v755
        %v772 = vadd.f32 %v721, %v756
        %v773 = vadd.f32 %v722, %v757
        %v774 = vadd.f32 %v723, %v758
        %v775 = vadd.f32 %v724, %v759
        %s776 = sld [smem:[#allocation4 + $0x5]]
        %s777 = scalar_lea.vmem %s417, 640 [#allocation9]
        %v778 = vld [vmem:[%s777] sm:$0xff]
        %v779 = vld [vmem:[%s777 + $0x8] sm:$0xff]
        %v780 = vld [vmem:[%s777 + $0x10] sm:$0xff]
        %v781 = vld [vmem:[%s777 + $0x18] sm:$0xff]
        %v782 = vld [vmem:[%s777 + $0x20] sm:$0xff]
        %v783 = vld [vmem:[%s777 + $0x28] sm:$0xff]
        %v784 = vld [vmem:[%s777 + $0x30] sm:$0xff]
        %v785 = vld [vmem:[%s777 + $0x38] sm:$0xff]
        %v786 = vld [vmem:[%s777 + $0x40] sm:$0xff]
        %v787 = vld [vmem:[%s777 + $0x48] sm:$0xff]
        %v788 = vld [vmem:[%s777 + $0x50] sm:$0xff]
        %v789 = vld [vmem:[%s777 + $0x58] sm:$0xff]
        %v790 = vld [vmem:[%s777 + $0x60] sm:$0xff]
        %v791 = vld [vmem:[%s777 + $0x68] sm:$0xff]
        %v792 = vld [vmem:[%s777 + $0x70] sm:$0xff]
        %v793 = vld [vmem:[%s777 + $0x78] sm:$0xff]
        %v794 = vstv %s776
        %v795 = vmul.f32 %v794, %v778
        %v796 = vmul.f32 %v794, %v779
        %v797 = vmul.f32 %v794, %v780
        %v798 = vmul.f32 %v794, %v781
        %v799 = vmul.f32 %v794, %v782
        %v800 = vmul.f32 %v794, %v783
        %v801 = vmul.f32 %v794, %v784
        %v802 = vmul.f32 %v794, %v785
        %v803 = vmul.f32 %v794, %v786
        %v804 = vmul.f32 %v794, %v787
        %v805 = vmul.f32 %v794, %v788
        %v806 = vmul.f32 %v794, %v789
        %v807 = vmul.f32 %v794, %v790
        %v808 = vmul.f32 %v794, %v791
        %v809 = vmul.f32 %v794, %v792
        %v810 = vmul.f32 %v794, %v793
        %v811 = vadd.f32 %v760, %v795
        %v812 = vadd.f32 %v761, %v796
        %v813 = vadd.f32 %v762, %v797
        %v814 = vadd.f32 %v763, %v798
        %v815 = vadd.f32 %v764, %v799
        %v816 = vadd.f32 %v765, %v800
        %v817 = vadd.f32 %v766, %v801
        %v818 = vadd.f32 %v767, %v802
        %v819 = vadd.f32 %v768, %v803
        %v820 = vadd.f32 %v769, %v804
        %v821 = vadd.f32 %v770, %v805
        %v822 = vadd.f32 %v771, %v806
        %v823 = vadd.f32 %v772, %v807
        %v824 = vadd.f32 %v773, %v808
        %v825 = vadd.f32 %v774, %v809
        %v826 = vadd.f32 %v775, %v810
        %s827 = sld [smem:[#allocation4 + $0x6]]
        %s828 = scalar_lea.vmem %s417, 768 [#allocation9]
        %v829 = vld [vmem:[%s828] sm:$0xff]
        %v830 = vld [vmem:[%s828 + $0x8] sm:$0xff]
        %v831 = vld [vmem:[%s828 + $0x10] sm:$0xff]
        %v832 = vld [vmem:[%s828 + $0x18] sm:$0xff]
        %v833 = vld [vmem:[%s828 + $0x20] sm:$0xff]
        %v834 = vld [vmem:[%s828 + $0x28] sm:$0xff]
        %v835 = vld [vmem:[%s828 + $0x30] sm:$0xff]
        %v836 = vld [vmem:[%s828 + $0x38] sm:$0xff]
        %v837 = vld [vmem:[%s828 + $0x40] sm:$0xff]
        %v838 = vld [vmem:[%s828 + $0x48] sm:$0xff]
        %v839 = vld [vmem:[%s828 + $0x50] sm:$0xff]
        %v840 = vld [vmem:[%s828 + $0x58] sm:$0xff]
        %v841 = vld [vmem:[%s828 + $0x60] sm:$0xff]
        %v842 = vld [vmem:[%s828 + $0x68] sm:$0xff]
        %v843 = vld [vmem:[%s828 + $0x70] sm:$0xff]
        %v844 = vld [vmem:[%s828 + $0x78] sm:$0xff]
        %v845 = vstv %s827
        %v846 = vmul.f32 %v845, %v829
        %v847 = vmul.f32 %v845, %v830
        %v848 = vmul.f32 %v845, %v831
        %v849 = vmul.f32 %v845, %v832
        %v850 = vmul.f32 %v845, %v833
        %v851 = vmul.f32 %v845, %v834
        %v852 = vmul.f32 %v845, %v835
        %v853 = vmul.f32 %v845, %v836
        %v854 = vmul.f32 %v845, %v837
        %v855 = vmul.f32 %v845, %v838
        %v856 = vmul.f32 %v845, %v839
        %v857 = vmul.f32 %v845, %v840
        %v858 = vmul.f32 %v845, %v841
        %v859 = vmul.f32 %v845, %v842
        %v860 = vmul.f32 %v845, %v843
        %v861 = vmul.f32 %v845, %v844
        %v862 = vadd.f32 %v811, %v846
        %v863 = vadd.f32 %v812, %v847
        %v864 = vadd.f32 %v813, %v848
        %v865 = vadd.f32 %v814, %v849
        %v866 = vadd.f32 %v815, %v850
        %v867 = vadd.f32 %v816, %v851
        %v868 = vadd.f32 %v817, %v852
        %v869 = vadd.f32 %v818, %v853
        %v870 = vadd.f32 %v819, %v854
        %v871 = vadd.f32 %v820, %v855
        %v872 = vadd.f32 %v821, %v856
        %v873 = vadd.f32 %v822, %v857
        %v874 = vadd.f32 %v823, %v858
        %v875 = vadd.f32 %v824, %v859
        %v876 = vadd.f32 %v825, %v860
        %v877 = vadd.f32 %v826, %v861
        %s878 = sld [smem:[#allocation4 + $0x7]]
        %s879 = scalar_lea.vmem %s417, 896 [#allocation9]
        %v880 = vld [vmem:[%s879] sm:$0xff]
        %v881 = vld [vmem:[%s879 + $0x8] sm:$0xff]
        %v882 = vld [vmem:[%s879 + $0x10] sm:$0xff]
        %v883 = vld [vmem:[%s879 + $0x18] sm:$0xff]
        %v884 = vld [vmem:[%s879 + $0x20] sm:$0xff]
        %v885 = vld [vmem:[%s879 + $0x28] sm:$0xff]
        %v886 = vld [vmem:[%s879 + $0x30] sm:$0xff]
        %v887 = vld [vmem:[%s879 + $0x38] sm:$0xff]
        %v888 = vld [vmem:[%s879 + $0x40] sm:$0xff]
        %v889 = vld [vmem:[%s879 + $0x48] sm:$0xff]
        %v890 = vld [vmem:[%s879 + $0x50] sm:$0xff]
        %v891 = vld [vmem:[%s879 + $0x58] sm:$0xff]
        %v892 = vld [vmem:[%s879 + $0x60] sm:$0xff]
        %v893 = vld [vmem:[%s879 + $0x68] sm:$0xff]
        %v894 = vld [vmem:[%s879 + $0x70] sm:$0xff]
        %v895 = vld [vmem:[%s879 + $0x78] sm:$0xff]
        %v896 = vstv %s878
        %v897 = vmul.f32 %v896, %v880
        %v898 = vmul.f32 %v896, %v881
        %v899 = vmul.f32 %v896, %v882
        %v900 = vmul.f32 %v896, %v883
        %v901 = vmul.f32 %v896, %v884
        %v902 = vmul.f32 %v896, %v885
        %v903 = vmul.f32 %v896, %v886
        %v904 = vmul.f32 %v896, %v887
        %v905 = vmul.f32 %v896, %v888
        %v906 = vmul.f32 %v896, %v889
        %v907 = vmul.f32 %v896, %v890
        %v908 = vmul.f32 %v896, %v891
        %v909 = vmul.f32 %v896, %v892
        %v910 = vmul.f32 %v896, %v893
        %v911 = vmul.f32 %v896, %v894
        %v912 = vmul.f32 %v896, %v895
        %v913 = vadd.f32 %v862, %v897
        %v914 = vadd.f32 %v863, %v898
        %v915 = vadd.f32 %v864, %v899
        %v916 = vadd.f32 %v865, %v900
        %v917 = vadd.f32 %v866, %v901
        %v918 = vadd.f32 %v867, %v902
        %v919 = vadd.f32 %v868, %v903
        %v920 = vadd.f32 %v869, %v904
        %v921 = vadd.f32 %v870, %v905
        %v922 = vadd.f32 %v871, %v906
        %v923 = vadd.f32 %v872, %v907
        %v924 = vadd.f32 %v873, %v908
        %v925 = vadd.f32 %v874, %v909
        %v926 = vadd.f32 %v875, %v910
        %v927 = vadd.f32 %v876, %v911
        %v928 = vadd.f32 %v877, %v912
        %929 = vst [vmem:[#allocation3] sm:$0xff] %v913
        %930 = vst [vmem:[#allocation3 + $0x8] sm:$0xff] %v914
        %931 = vst [vmem:[#allocation3 + $0x10] sm:$0xff] %v915
        %932 = vst [vmem:[#allocation3 + $0x18] sm:$0xff] %v916
        %933 = vst [vmem:[#allocation3 + $0x20] sm:$0xff] %v917
        %934 = vst [vmem:[#allocation3 + $0x28] sm:$0xff] %v918
        %935 = vst [vmem:[#allocation3 + $0x30] sm:$0xff] %v919
        %936 = vst [vmem:[#allocation3 + $0x38] sm:$0xff] %v920
        %937 = vst [vmem:[#allocation3 + $0x40] sm:$0xff] %v921
        %938 = vst [vmem:[#allocation3 + $0x48] sm:$0xff] %v922
        %939 = vst [vmem:[#allocation3 + $0x50] sm:$0xff] %v923
        %940 = vst [vmem:[#allocation3 + $0x58] sm:$0xff] %v924
        %941 = vst [vmem:[#allocation3 + $0x60] sm:$0xff] %v925
        %942 = vst [vmem:[#allocation3 + $0x68] sm:$0xff] %v926
        %943 = vst [vmem:[#allocation3 + $0x70] sm:$0xff] %v927
        %944 = vst [vmem:[#allocation3 + $0x78] sm:$0xff] %v928
        %v945 = vld [vmem:[#allocation2] sm:$0xff]
        %v946 = vld [vmem:[#allocation2 + $0x8] sm:$0xff]
        %v947 = vld [vmem:[%s407] sm:$0xff]
        %v948 = vld [vmem:[%s407 + $0x8] sm:$0xff]
        %v949 = vld [vmem:[#allocation3] sm:$0xff]
        %v950 = vld [vmem:[#allocation3 + $0x8] sm:$0xff]
        %v951 = vld [vmem:[#allocation3 + $0x10] sm:$0xff]
        %v952 = vld [vmem:[#allocation3 + $0x18] sm:$0xff]
        %v953 = vld [vmem:[#allocation3 + $0x20] sm:$0xff]
        %v954 = vld [vmem:[#allocation3 + $0x28] sm:$0xff]
        %v955 = vld [vmem:[#allocation3 + $0x30] sm:$0xff]
        %v956 = vld [vmem:[#allocation3 + $0x38] sm:$0xff]
        %v957 = vld [vmem:[#allocation3 + $0x40] sm:$0xff]
        %v958 = vld [vmem:[#allocation3 + $0x48] sm:$0xff]
        %v959 = vld [vmem:[#allocation3 + $0x50] sm:$0xff]
        %v960 = vld [vmem:[#allocation3 + $0x58] sm:$0xff]
        %v961 = vld [vmem:[#allocation3 + $0x60] sm:$0xff]
        %v962 = vld [vmem:[#allocation3 + $0x68] sm:$0xff]
        %v963 = vld [vmem:[#allocation3 + $0x70] sm:$0xff]
        %v964 = vld [vmem:[#allocation3 + $0x78] sm:$0xff]
        %965 = vmatpush.msra.mxu0 %v964
        %966 = vmatpush.msra.mxu0 %v963
        %967 = vmatpush.msra.mxu0 %v962
        %968 = vmatpush.msra.mxu0 %v961
        %969 = vmatpush.msra.mxu0 %v960
        %970 = vmatpush.msra.mxu0 %v959
        %971 = vmatpush.msra.mxu0 %v958
        %972 = vmatpush.msra.mxu0 %v957
        %973 = vmatpush.msra.mxu0 %v956
        %974 = vmatpush.msra.mxu0 %v955
        %975 = vmatpush.msra.mxu0 %v954
        %976 = vmatpush.msra.mxu0 %v953
        %977 = vmatpush.msra.mxu0 %v952
        %978 = vmatpush.msra.mxu0 %v951
        %979 = vmatpush.msra.mxu0 %v950
        %980 = vmatpush.msra.mxu0 %v949
        %981 = vmatmul.f32.gmra.mxu0 %v947
        %v982 = vpop.f32.mrf.mxu0
        %v983 = vadd.f32 0.0, %v982
        %984 = vmatmul.f32.gmra.mxu0 %v948
        %v985 = vpop.f32.mrf.mxu0
        %v986 = vadd.f32 0.0, %v985
        %987 = vdwg.mxu0
        %v988 = vadd.f32 %v945, %v983
        %v989 = vadd.f32 %v946, %v986
        %990 = vst [vmem:[#allocation2] sm:$0xff] %v988
        %991 = vst [vmem:[#allocation2 + $0x8] sm:$0xff] %v989
        %p992 = scmp.eq.s32.totalorder %s37, 1
        // Predicated region
        $region73: #{tpu_custom_call.1} parent=43 // pred_check
          %p993 = pneg %p992
        $region74: #{tpu_custom_call.1} parent=43 // pred_check_branch
          %995 = sbr.rel (%p993) target = $region76
        $region75: #{tpu_custom_call.1} parent=43 // pred_region
          %v996 = vld [vmem:[%s437] sm:$0xff]
          %v997 = vld [vmem:[%s446] sm:$0x1]
          %s998 = sld [smem:[#allocation4]]
          %v999 = vstv %s998
          %v1000 = vmul.f32 %v999, %v996
          %v1001 = vadd.f32 %v997, %v1000
          %s1002 = sld [smem:[#allocation4 + $0x1]]
          %v1003 = vstv %s1002
          %v1004 = vmul.f32 %v1003, %v996
          %1006 = vst [vmem:[#allocation1] sm:$0xff] %v1004
          %s1007 = scalar_lea.vmem [#allocation1], 1
          %v1008 = vld [vmem:[%s1007] ss:$9 sm:$0xff]
          %v1010 = vadd.f32 %v1001, %v1008
          %s1011 = sld [smem:[#allocation4 + $0x2]]
          %v1012 = vstv %s1011
          %v1013 = vmul.f32 %v1012, %v996
          %1015 = vst [vmem:[#allocation1] sm:$0xff] %v1013
          %s1016 = scalar_lea.vmem [#allocation1], 2
          %v1017 = vld [vmem:[%s1016] ss:$9 sm:$0xff]
          %v1019 = vadd.f32 %v1010, %v1017
          %s1020 = sld [smem:[#allocation4 + $0x3]]
          %v1021 = vstv %s1020
          %v1022 = vmul.f32 %v1021, %v996
          %1024 = vst [vmem:[#allocation1] sm:$0xff] %v1022
          %s1025 = scalar_lea.vmem [#allocation1], 3
          %v1026 = vld [vmem:[%s1025] ss:$9 sm:$0xff]
          %v1028 = vadd.f32 %v1019, %v1026
          %s1029 = sld [smem:[#allocation4 + $0x4]]
          %v1030 = vstv %s1029
          %v1031 = vmul.f32 %v1030, %v996
          %1033 = vst [vmem:[#allocation1] sm:$0xff] %v1031
          %s1034 = scalar_lea.vmem [#allocation1], 4
          %v1035 = vld [vmem:[%s1034] ss:$9 sm:$0xff]
          %v1037 = vadd.f32 %v1028, %v1035
          %s1038 = sld [smem:[#allocation4 + $0x5]]
          %v1039 = vstv %s1038
          %v1040 = vmul.f32 %v1039, %v996
          %1042 = vst [vmem:[#allocation1] sm:$0xff] %v1040
          %s1043 = scalar_lea.vmem [#allocation1], 5
          %v1044 = vld [vmem:[%s1043] ss:$9 sm:$0xff]
          %v1046 = vadd.f32 %v1037, %v1044
          %s1047 = sld [smem:[#allocation4 + $0x6]]
          %v1048 = vstv %s1047
          %v1049 = vmul.f32 %v1048, %v996
          %1051 = vst [vmem:[#allocation1] sm:$0xff] %v1049
          %s1052 = scalar_lea.vmem [#allocation1], 6
          %v1053 = vld [vmem:[%s1052] ss:$9 sm:$0xff]
          %v1055 = vadd.f32 %v1046, %v1053
          %s1056 = sld [smem:[#allocation4 + $0x7]]
          %v1057 = vstv %s1056
          %v1058 = vmul.f32 %v1057, %v996
          %1060 = vst [vmem:[#allocation1] sm:$0xff] %v1058
          %s1061 = scalar_lea.vmem [#allocation1], 7
          %v1062 = vld [vmem:[%s1061] ss:$9 sm:$0xff]
          %v1064 = vadd.f32 %v1055, %v1062
          %v1065 = vld [vmem:[#allocation2] sm:$0xff]
          %v1066 = vld [vmem:[#allocation2 + $0x8] sm:$0xff]
          %v1068 = vperm.slane %v1064, 0
          %v1070 = vadd.f32 %v1065, %v1068
          %v1071 = vadd.f32 %v1066, %v1068
          %1072 = vst [vmem:[%s495] sm:$0xff] %v1070
          %1073 = vst [vmem:[%s495 + $0x8] sm:$0xff] %v1071
        $region76: #{tpu_custom_call.1} parent=43 // pred_fallthru
          _
        %s1074 = sand.u32 %s216, 1
        %s1075 = scalar_lea.sflag [#allocation6], %s1074
        %s1076 = sand.u32 %s216, 1
        %s1077 = smul.addr %s1076, 16
        %s1078 = scalar_lea.vmem [#allocation15], %s1077
        // Predicated region
        $region77: #{tpu_custom_call.1} parent=43 // pred_check
          %p1079 = pneg %p226
        $region78: #{tpu_custom_call.1} parent=43 // pred_check_branch
          %1081 = sbr.rel (%p1079) target = $region80
        $region79: #{tpu_custom_call.1} parent=43 // pred_region
          %s1082 = smul.u32 2, %s35
          %1084 = vsyncadd %s1075, 0
          %s1085 = smul.addr %s1082, 2
          %s1086 = sadd.s32 %s36, %s1085
          %s1087 = smul.addr %s1086, 8
          %s1088 = scalar_lea.hbm %s6, %s1087
          %s1089 = sshll.u32 %s1078, 4
          %s1090 = int_to_ptr.vmem [resolvable:$true] %s1089
          %s1091 = sshll.u32 %s1088, 4
          %s1092 = int_to_ptr.hbm [resolvable:$true] %s1091
          %1097 = dma.vmem_to_hbm [thread:$0]  %s1090, 256, %s1092, %s1075, 128, 256, 8
        $region80: #{tpu_custom_call.1} parent=43 // pred_fallthru
          _
      $region44: #{tpu_custom_call.1} parent=5 // pred_fallthru
        _
      %p1098 = scmp.le.s32.totalorder 2, %s25
      // Predicated region
      $region81: #{tpu_custom_call.1} parent=5 // pred_check
        %p1099 = pneg %p1098
      $region82: #{tpu_custom_call.1} parent=5 // pred_check_branch
        %1101 = sbr.rel (%p1099) target = $region84
      $region83: #{tpu_custom_call.1} parent=5 // pred_region
        %s1102 = ssub.s32 %s25, 2
        // Predicated region
        $region85: #{tpu_custom_call.1} parent=83 // pred_check
          %p1103 = pneg %p232
        $region86: #{tpu_custom_call.1} parent=83 // pred_check_branch
          %1105 = sbr.rel (%p1103) target = $region88
        $region87: #{tpu_custom_call.1} parent=83 // pred_region
          %s1106 = sand.u32 %s217, 1
          %s1107 = scalar_lea.sflag [#allocation6], %s1106
          %s1108 = sand.u32 %s217, 1
          %s1109 = smul.addr %s1108, 16
          %s1110 = scalar_lea.vmem [#allocation15], %s1109
          %1112 = dma.done %s1107, 256
        $region88: #{tpu_custom_call.1} parent=83 // pred_fallthru
          _
      $region84: #{tpu_custom_call.1} parent=5 // pred_fallthru
        _
    $region6: #{tpu_custom_call.1} parent=1 // loop_footer
      %s29 = sadd.s32 1, %s25
    $region7: #{tpu_custom_call.1} parent=1 // loop_footer_branch
      %24 = sbr.rel target = $region3
    $region8: #{tpu_custom_call.1} parent=1 // loop_exit
      _
    %1113 = vsyncpa [#allocation5], 1
    %s1114 = scalar_lea.sflag [#allocation5], 1
    %1115 = vsyncpa %s1114, 1
    %1116 = vsyncpa [#allocation10], 1
    %s1117 = scalar_lea.sflag [#allocation10], 1
    %1118 = vsyncpa %s1117, 1
    %1119 = vsyncpa [#allocation13], 1
    %s1120 = scalar_lea.sflag [#allocation13], 1
    %1121 = vsyncpa %s1120, 1
    %1122 = vsyncpa [#allocation6], 1
    %s1123 = scalar_lea.sflag [#allocation6], 1
    %1124 = vsyncpa %s1123, 1
    %1125 = vsyncpa [#allocation7], 1
    %s1126 = scalar_lea.sflag [#allocation7], 1
    %1127 = vsyncpa %s1126, 1

</llo_original>
